<compile_context>
chip_gen: v7x
topology: tpu7x:2x2x1
jax: 0.10.0
libtpu: 0.0.40
codegen_flags: <defaults>
</compile_context>

<pallas_src>
import functools

import jax
import jax.numpy as jnp
from jax.experimental import pallas as pl
from jax.experimental.pallas import tpu as pltpu

_NEG_PAD = -1e30  # bias for padded vocab columns: exp(logit - max) underflows to 0


def _round_up(x: int, m: int) -> int:
    return (x + m - 1) // m * m


# ---------------------------------------------------------------------------
# Fused kernel: per-tile logits + online logsumexp + in-place normalization.
#   grid = (M tiles [parallel], vocab tiles [arbitrary, last])
#   out_ref is the (tm, N_pad) log-prob slab, resident across the vocab sweep.
# ---------------------------------------------------------------------------
def _generator_kernel(x_ref, w_ref, b_ref, out_ref, m_sc, l_sc, *, tn, gn):
    j = pl.program_id(1)

    @pl.when(j == 0)
    def _():
        m_sc[...] = jnp.full_like(m_sc, -jnp.inf)
        l_sc[...] = jnp.zeros_like(l_sc)

    # MXU matmul with f32 accumulation; bias add + softmax stats stay in f32.
    logits = jnp.dot(x_ref[...], w_ref[...], preferred_element_type=jnp.float32)
    logits = logits + b_ref[...]

    # Write the raw logits tile into its (static, lane-aligned) column slice of
    # the resident output slab.  gn is a trace-time constant; exactly one
    # branch executes per grid step.
    for k in range(gn):
        @pl.when(j == k)
        def _(k=k):
            out_ref[:, k * tn:(k + 1) * tn] = logits.astype(out_ref.dtype)

    # Online logsumexp update (numerically safe: alpha <= 1 by construction).
    m_prev = m_sc[...]
    m_new = jnp.maximum(m_prev, jnp.max(logits, axis=-1, keepdims=True))
    alpha = jnp.exp(m_prev - m_new)
    l_sc[...] = alpha * l_sc[...] + jnp.sum(
        jnp.exp(logits - m_new), axis=-1, keepdims=True)
    m_sc[...] = m_new

    # Last vocab tile: subtract the logsumexp in place and cast.
    @pl.when(j == pl.num_programs(1) - 1)
    def _():
        lse = m_sc[...] + jnp.log(l_sc[...])
        out_ref[...] = (out_ref[...].astype(jnp.float32) - lse).astype(out_ref.dtype)


# ---------------------------------------------------------------------------
# Host-side parameter staging (do this ONCE, reuse across forward calls).
# ---------------------------------------------------------------------------
def prepare_generator_params(w, b, *, tn=1024, compute_dtype=jnp.bfloat16):
    """w: (ntoken, d_model) PyTorch nn.Linear layout; b: (ntoken,).

    Returns (w_t, b_p, ntoken, tn_eff) with w already transposed to
    (d_model, N_pad), vocab-padded and cast to the MXU compute dtype, and the
    bias padded with -1e30 so padded columns never affect the softmax.
    """
    ntoken, d_model = w.shape
    cd = jnp.dtype(compute_dtype)
    tn_eff = _round_up(min(int(tn), _round_up(ntoken, 128)), 128)
    n_pad = _round_up(ntoken, tn_eff)
    w_t = jnp.pad(w.T.astype(cd), ((0, 0), (0, n_pad - ntoken)))
    b_p = jnp.pad(b.astype(jnp.float32), (0, n_pad - ntoken),
                  constant_values=_NEG_PAD).reshape(1, n_pad)
    return w_t, b_p, int(ntoken), int(tn_eff)


# ---------------------------------------------------------------------------
# Forward pass with pre-staged parameters.
# ---------------------------------------------------------------------------
def generator_forward_prepared(x, w_t, b_p, ntoken, tn_eff, *, tm=256,
                               out_dtype=None):
    orig_shape = x.shape
    d_model = orig_shape[-1]
    n_pad = w_t.shape[1]
    assert w_t.shape[0] == d_model and b_p.shape == (1, n_pad)
    assert n_pad % tn_eff == 0

    cd = w_t.dtype
    out_dtype = x.dtype if out_dtype is None else out_dtype
    out_itemsize = jnp.dtype(out_dtype).itemsize

    x2d = x.reshape(-1, d_model)
    M = x2d.shape[0]

    # ---- row (M) tiling: big tiles, but respect the VMEM budget -------------
    tm_eff = _round_up(min(int(tm), _round_up(M, 8)), 8)

    try:
        vmem_cap = int(pltpu.get_tpu_info().vmem_capacity_bytes)
    except Exception:
        vmem_cap = 64 << 20  # conservative (v7x per-TensorCore)
    budget = vmem_cap - (8 << 20)

    def _need(tm_):
        return (2 * tm_ * n_pad * out_itemsize          # resident log-prob slab
                + 2 * tm_ * d_model * cd.itemsize       # x row tile (dbl-buffered)
                + 2 * d_model * tn_eff * cd.itemsize    # weight tile
                + 2 * tn_eff * 4                        # bias tile
                + 2 * tm_ * 4)                          # lse scratch

    while tm_eff > 8 and _need(tm_eff) > budget:
        tm_eff = max(8, _round_up(tm_eff // 2, 8))

    M_pad = _round_up(M, tm_eff)
    gm, gn = M_pad // tm_eff, n_pad // tn_eff

    x_p = jnp.pad(x2d.astype(cd), ((0, M_pad - M), (0, 0)))

    vmem_limit = max(32 << 20, _need(tm_eff) + (2 << 20))
    vmem_limit = int(min(vmem_limit, vmem_cap - (4 << 20)))

    cost = pl.CostEstimate(
        flops=int(2 * M_pad * d_model * n_pad),
        transcendentals=int(M_pad * n_pad),
        bytes_accessed=int(M_pad * d_model * cd.itemsize
                           + gm * d_model * n_pad * cd.itemsize  # W streamed per row tile
                           + n_pad * 4
                           + M_pad * n_pad * out_itemsize),
    )

    kernel = functools.partial(_generator_kernel, tn=tn_eff, gn=gn)

    out_p = pl.pallas_call(
        kernel,
        out_shape=jax.ShapeDtypeStruct((M_pad, n_pad), out_dtype),
        grid_spec=pltpu.PrefetchScalarGridSpec(
            num_scalar_prefetch=0,
            grid=(gm, gn),
            in_specs=[
                pl.BlockSpec((tm_eff, d_model), lambda i, j: (i, 0)),   # x rows
                pl.BlockSpec((d_model, tn_eff), lambda i, j: (0, j)),   # W tile
                pl.BlockSpec((1, tn_eff), lambda i, j: (0, j)),         # bias tile
            ],
            out_specs=pl.BlockSpec((tm_eff, n_pad), lambda i, j: (i, 0)),  # resident
            scratch_shapes=[pltpu.VMEM((tm_eff, 1), jnp.float32),
                            pltpu.VMEM((tm_eff, 1), jnp.float32)],
        ),
        compiler_params=pltpu.CompilerParams(
            dimension_semantics=("parallel", "arbitrary"),
            vmem_limit_bytes=vmem_limit),
        cost_estimate=cost,
    )(x_p, w_t, b_p)

    # No-op when M % tm_eff == 0 and ntoken % tn_eff == 0 (no padding present).
    return out_p[:M, :ntoken].reshape(*orig_shape[:-1], ntoken)


# ---------------------------------------------------------------------------
# Convenience wrapper matching the PyTorch module signature.
# ---------------------------------------------------------------------------
def generator_forward(x, w, b, *, tm=256, tn=1024,
                      compute_dtype=jnp.bfloat16, out_dtype=None):
    """log_softmax(x @ w.T + b, axis=-1).

    x: (..., d_model); w: (ntoken, d_model) (PyTorch layout); b: (ntoken,).
    For repeated calls, stage the weights once with prepare_generator_params()
    and call generator_forward_prepared() instead.
    """
    params = prepare_generator_params(w, b, tn=tn, compute_dtype=compute_dtype)
    return generator_forward_prepared(x, *params, tm=tm, out_dtype=out_dtype)


if __name__ == "__main__":
    key = jax.random.PRNGKey(0)

    # ---- Test 1: f32 MXU operands, non-128-multiple vocab (exercises vocab
    #      padding + the multi-tile online-logsumexp + fused normalize). ------
    batch, seq, d_model, ntoken = 2, 8, 32, 1000
    k1, k2, k3, key = jax.random.split(key, 4)
    x = jax.random.normal(k1, (batch, seq, d_model), dtype=jnp.float32)
    bound = 1.0 / (d_model ** 0.5)
    W = jax.random.uniform(k2, (ntoken, d_model), minval=-bound, maxval=bound,
                           dtype=jnp.float32)
    b = jax.random.uniform(k3, (ntoken,), minval=-bound, maxval=bound,
                           dtype=jnp.float32)

    out = generator_forward(x, W, b, tm=128, tn=512,
                            compute_dtype=jnp.float32)
    out = jax.block_until_ready(out)
    ref = jax.nn.log_softmax(x @ W.T + b, axis=-1)
    assert out.shape == (batch, seq, ntoken)
    err = float(jnp.max(jnp.abs(out - ref)))
    assert jnp.allclose(out, ref, atol=1e-4, rtol=1e-4), err

    # ---- Test 2: pre-staged params, bf16 MXU operands, multiple row tiles
    #      AND multiple vocab tiles (f32 accumulation + f32 softmax math). ----
    batch, seq, d_model, ntoken = 4, 96, 64, 512
    k1, k2, k3, key = jax.random.split(key, 4)
    x = jax.random.normal(k1, (batch, seq, d_model), dtype=jnp.float32)
    bound = 1.0 / (d_model ** 0.5)
    W = jax.random.uniform(k2, (ntoken, d_model), minval=-bound, maxval=bound,
                           dtype=jnp.float32)
    b = jax.random.uniform(k3, (ntoken,), minval=-bound, maxval=bound,
                           dtype=jnp.float32)

    params = prepare_generator_params(W, b, tn=256, compute_dtype=jnp.bfloat16)
    out_bf16 = generator_forward_prepared(x, *params, tm=256)
    out_bf16 = jax.block_until_ready(out_bf16)
    ref = jax.nn.log_softmax(x @ W.T + b, axis=-1)
    assert out_bf16.shape == (batch, seq, ntoken)
    err = float(jnp.max(jnp.abs(out_bf16 - ref)))
    assert jnp.allclose(out_bf16, ref, atol=5e-2, rtol=5e-2), err

    print("KERNEL_OK")
</pallas_src>

<mosaic_0001>
module attributes {stable_mosaic.version = 11 : i64} {
  func.func @_generator_kernel(%arg0: i32, %arg1: i32, %arg2: memref<16x32xf32, #tpu.memory_space<vmem>>, %arg3: memref<32x512xf32, #tpu.memory_space<vmem>>, %arg4: memref<1x512xf32, #tpu.memory_space<vmem>>, %arg5: memref<16x1024xf32, #tpu.memory_space<vmem>>, %arg6: memref<16x1xf32, #tpu.memory_space<vmem>>, %arg7: memref<16x1xf32, #tpu.memory_space<vmem>>) attributes {dimension_semantics = [#tpu.dimension_semantics<parallel>, #tpu.dimension_semantics<arbitrary>], iteration_bounds = array<i64: 1, 2>, scalar_prefetch = 0 : i64, scratch_operands = 2 : i64, tpu.core_type = #tpu.core_type<tc>, window_params = [{transform_indices = @transform_0, window_bounds = array<i64: 16, 32>}, {transform_indices = @transform_1, window_bounds = array<i64: 32, 512>}, {transform_indices = @transform_2, window_bounds = array<i64: 1, 512>}, {transform_indices = @transform_3, window_bounds = array<i64: 16, 1024>}]} {
    %c0_i32 = arith.constant 0 : i32
    %0 = arith.cmpi eq, %arg1, %c0_i32 : i32
    %1 = arith.extui %0 : i1 to i32
    %c0_i32_0 = arith.constant 0 : i32
    %2 = arith.cmpi ne, %1, %c0_i32_0 : i32
    scf.if %2 {
      %cst_21 = arith.constant 0xFF800000 : f32
      %34 = vector.broadcast %cst_21 : f32 to vector<16x1xf32>
      %c0_22 = arith.constant 0 : index
      %c0_23 = arith.constant 0 : index
      %35 = vector.load %arg6[%c0_22, %c0_23] : memref<16x1xf32, #tpu.memory_space<vmem>>, vector<16x1xf32>
      tpu.vector_store %arg6[%c0_22, %c0_23], %34 {strides = array<i32>} : memref<16x1xf32, #tpu.memory_space<vmem>>, vector<16x1xf32>,
      %cst_24 = arith.constant 0.000000e+00 : f32
      %36 = vector.broadcast %cst_24 : f32 to vector<16x1xf32>
      %c0_25 = arith.constant 0 : index
      %c0_26 = arith.constant 0 : index
      %37 = vector.load %arg7[%c0_25, %c0_26] : memref<16x1xf32, #tpu.memory_space<vmem>>, vector<16x1xf32>
      tpu.vector_store %arg7[%c0_25, %c0_26], %36 {strides = array<i32>} : memref<16x1xf32, #tpu.memory_space<vmem>>, vector<16x1xf32>,
    } else {
    }
    %c0 = arith.constant 0 : index
    %c0_1 = arith.constant 0 : index
    %3 = vector.load %arg2[%c0, %c0_1] : memref<16x32xf32, #tpu.memory_space<vmem>>, vector<16x32xf32>
    %c0_2 = arith.constant 0 : index
    %c0_3 = arith.constant 0 : index
    %4 = vector.load %arg3[%c0_2, %c0_3] : memref<32x512xf32, #tpu.memory_space<vmem>>, vector<32x512xf32>
    %cst = arith.constant dense<0.000000e+00> : vector<16x512xf32>
    %5 = tpu.matmul %3, %4, %cst {dimension_numbers = #tpu.dot_dimension_numbers<[1], [0], [0], [1], [0, 0, 1, 1], [], []>} : vector<16x32xf32>, vector<32x512xf32>, vector<16x512xf32> -> vector<16x512xf32>
    %c0_4 = arith.constant 0 : index
    %c0_5 = arith.constant 0 : index
    %6 = vector.load %arg4[%c0_4, %c0_5] : memref<1x512xf32, #tpu.memory_space<vmem>>, vector<1x512xf32>
    %7 = vector.broadcast %6 : vector<1x512xf32> to vector<16x512xf32>
    %8 = arith.addf %5, %7 : vector<16x512xf32>
    %c0_i32_6 = arith.constant 0 : i32
    %9 = arith.cmpi eq, %arg1, %c0_i32_6 : i32
    %10 = arith.extui %9 : i1 to i32
    %c0_i32_7 = arith.constant 0 : i32
    %11 = arith.cmpi ne, %10, %c0_i32_7 : i32
    scf.if %11 {
      %c0_21 = arith.constant 0 : index
      %c0_22 = arith.constant 0 : index
      %34 = vector.load %arg5[%c0_21, %c0_22] : memref<16x1024xf32, #tpu.memory_space<vmem>>, vector<16x512xf32>
      tpu.vector_store %arg5[%c0_21, %c0_22], %8 {strides = array<i32>} : memref<16x1024xf32, #tpu.memory_space<vmem>>, vector<16x512xf32>,
    } else {
    }
    %c1_i32 = arith.constant 1 : i32
    %12 = arith.cmpi eq, %arg1, %c1_i32 : i32
    %13 = arith.extui %12 : i1 to i32
    %c0_i32_8 = arith.constant 0 : i32
    %14 = arith.cmpi ne, %13, %c0_i32_8 : i32
    scf.if %14 {
      %c0_21 = arith.constant 0 : index
      %c512 = arith.constant 512 : index
      %34 = vector.load %arg5[%c0_21, %c512] : memref<16x1024xf32, #tpu.memory_space<vmem>>, vector<16x512xf32>
      tpu.vector_store %arg5[%c0_21, %c512], %8 {strides = array<i32>} : memref<16x1024xf32, #tpu.memory_space<vmem>>, vector<16x512xf32>,
    } else {
    }
    %c0_9 = arith.constant 0 : index
    %c0_10 = arith.constant 0 : index
    %15 = vector.load %arg6[%c0_9, %c0_10] : memref<16x1xf32, #tpu.memory_space<vmem>>, vector<16x1xf32>
    %cst_11 = arith.constant dense<0xFF800000> : vector<16xf32>
    %16 = vector.multi_reduction <maximumf>, %8, %cst_11 [1] : vector<16x512xf32> to vector<16xf32>
    %17 = vector.shape_cast %16 : vector<16xf32> to vector<16x1xf32>
    %18 = arith.maximumf %15, %17 : vector<16x1xf32>
    %19 = arith.subf %15, %18 : vector<16x1xf32>
    %20 = math.exp %19 : vector<16x1xf32>
    %c0_12 = arith.constant 0 : index
    %c0_13 = arith.constant 0 : index
    %21 = vector.load %arg7[%c0_12, %c0_13] : memref<16x1xf32, #tpu.memory_space<vmem>>, vector<16x1xf32>
    %22 = arith.mulf %20, %21 : vector<16x1xf32>
    %23 = vector.broadcast %18 : vector<16x1xf32> to vector<16x512xf32>
    %24 = arith.subf %8, %23 : vector<16x512xf32>
    %25 = math.exp %24 : vector<16x512xf32>
    %cst_14 = arith.constant dense<0.000000e+00> : vector<16xf32>
    %26 = vector.multi_reduction <add>, %25, %cst_14 [1] : vector<16x512xf32> to vector<16xf32>
    %27 = vector.shape_cast %26 : vector<16xf32> to vector<16x1xf32>
    %28 = arith.addf %22, %27 : vector<16x1xf32>
    %c0_15 = arith.constant 0 : index
    %c0_16 = arith.constant 0 : index
    %29 = vector.load %arg7[%c0_15, %c0_16] : memref<16x1xf32, #tpu.memory_space<vmem>>, vector<16x1xf32>
    tpu.vector_store %arg7[%c0_15, %c0_16], %28 {strides = array<i32>} : memref<16x1xf32, #tpu.memory_space<vmem>>, vector<16x1xf32>,
    %c0_17 = arith.constant 0 : index
    %c0_18 = arith.constant 0 : index
    %30 = vector.load %arg6[%c0_17, %c0_18] : memref<16x1xf32, #tpu.memory_space<vmem>>, vector<16x1xf32>
    tpu.vector_store %arg6[%c0_17, %c0_18], %18 {strides = array<i32>} : memref<16x1xf32, #tpu.memory_space<vmem>>, vector<16x1xf32>,
    %c1_i32_19 = arith.constant 1 : i32
    %31 = arith.cmpi eq, %arg1, %c1_i32_19 : i32
    %32 = arith.extui %31 : i1 to i32
    %c0_i32_20 = arith.constant 0 : i32
    %33 = arith.cmpi ne, %32, %c0_i32_20 : i32
    scf.if %33 {
      %c0_21 = arith.constant 0 : index
      %c0_22 = arith.constant 0 : index
      %34 = vector.load %arg6[%c0_21, %c0_22] : memref<16x1xf32, #tpu.memory_space<vmem>>, vector<16x1xf32>
      %c0_23 = arith.constant 0 : index
      %c0_24 = arith.constant 0 : index
      %35 = vector.load %arg7[%c0_23, %c0_24] : memref<16x1xf32, #tpu.memory_space<vmem>>, vector<16x1xf32>
      %36 = math.log %35 : vector<16x1xf32>
      %37 = arith.addf %34, %36 : vector<16x1xf32>
      %c0_25 = arith.constant 0 : index
      %c0_26 = arith.constant 0 : index
      %38 = vector.load %arg5[%c0_25, %c0_26] : memref<16x1024xf32, #tpu.memory_space<vmem>>, vector<16x1024xf32>
      %39 = vector.broadcast %37 : vector<16x1xf32> to vector<16x1024xf32>
      %40 = arith.subf %38, %39 : vector<16x1024xf32>
      %c0_27 = arith.constant 0 : index
      %c0_28 = arith.constant 0 : index
      %41 = vector.load %arg5[%c0_27, %c0_28] : memref<16x1024xf32, #tpu.memory_space<vmem>>, vector<16x1024xf32>
      tpu.vector_store %arg5[%c0_27, %c0_28], %40 {strides = array<i32>} : memref<16x1024xf32, #tpu.memory_space<vmem>>, vector<16x1024xf32>,
    } else {
    }
    return
  }
  func.func @transform_0(%arg0: i32, %arg1: i32) -> (i32, i32) {
    %c0_i32 = arith.constant 0 : i32
    %c0_i32_0 = arith.constant 0 : i32
    return %arg0, %c0_i32 : i32, i32
  }
  func.func @transform_1(%arg0: i32, %arg1: i32) -> (i32, i32) {
    %c0_i32 = arith.constant 0 : i32
    %c0_i32_0 = arith.constant 0 : i32
    return %c0_i32, %arg1 : i32, i32
  }
  func.func @transform_2(%arg0: i32, %arg1: i32) -> (i32, i32) {
    %c0_i32 = arith.constant 0 : i32
    %c0_i32_0 = arith.constant 0 : i32
    return %c0_i32, %arg1 : i32, i32
  }
  func.func @transform_3(%arg0: i32, %arg1: i32) -> (i32, i32) {
    %c0_i32 = arith.constant 0 : i32
    %c0_i32_0 = arith.constant 0 : i32
    return %arg0, %c0_i32 : i32, i32
  }
}

</mosaic_0001>

<llo_original>
// kernel: tpu_custom_call.1
$region0: #{tpu_custom_call.1}
  #allocation0 [shape = 'u32[]', space=smem, size = 0x4, offset = 0x4, fixed_abs, tag = 'smem constant byte address 0x4 - core index']
  #allocation1 [shape = 'u32[144,128]{1,0:T(1,128)}', space=vmem, size = 0x12000, scoped, tag = 'internal scratch']
  #allocation2 [shape = 'f32[16,1]{1,0:T(8,128)}', space=vmem, size = 0x2000, scoped, tag = 'scratch operand']
  #allocation3 [shape = 'f32[16,1]{1,0:T(8,128)}', space=vmem, size = 0x2000, scoped, tag = 'scratch operand']
  %s0 = inlined_call_operand.hbm [shape: f32[16,32], index: 0, kind: input, shape index: {}]
  %s1 = inlined_call_operand.hbm [shape: f32[32,1024], index: 1, kind: input, shape index: {}]
  %s2 = inlined_call_operand.hbm [shape: f32[1,1024], index: 2, kind: input, shape index: {}]
  %s3 = inlined_call_operand.hbm [shape: f32[16,1024], index: 3, kind: output, shape index: {}]
  %s4 = sld [smem:[#allocation0]]
  $region73: #{tpu_custom_call.1} parent=0
    _
  %s6 = ssub.s32 1, %s4
  %s7 = scalar_select 0, %s6, %s4
  $region1: #{tpu_custom_call.1} parent=0
    #allocation4 [shape = 'u8[8192]{0}', space=vmem, size = 0x2000, scoped, tag = 'input window, operand 0, single buffered']
    #allocation5 [shape = 's32[2]{0}', space=sflag, size = 0x8, scoped, tag = 'scoped memory for tpu_custom_call.1']
    #allocation6 [shape = 's32[2]{0}', space=sflag, size = 0x8, scoped, tag = 'scoped memory for tpu_custom_call.1']
    #allocation7 [shape = 'u8[131072]{0}', space=vmem, size = 0x20000, scoped, tag = 'input window, operand 1']
    #allocation8 [shape = 's32[2]{0}', space=sflag, size = 0x8, scoped, tag = 'scoped memory for tpu_custom_call.1']
    #allocation9 [shape = 'u8[4096]{0}', space=vmem, size = 0x1000, scoped, tag = 'input window, operand 2']
    #allocation10 [shape = 'u8[65536]{0}', space=vmem, size = 0x10000, scoped, tag = 'output window, operand 0, single buffered']
    %8 = vsyncpa [#allocation5], 0
    %9 = vsyncpa [#allocation8], 0
    %s10 = scalar_lea.sflag [#allocation8], 1
    %11 = vsyncpa %s10, 0
    %12 = vsyncpa [#allocation6], 0
    loop: start=0, step=1, limit=4
    $region2: #{tpu_custom_call.1} parent=1 // loop_pre_header
      _
    $region3: #{tpu_custom_call.1} parent=1 // loop_header
      %s14 = sphi 0, %s18
      %p15 = scmp.ge.s32.totalorder %s14, 4
      %s21 = sphi 0, %s33
      %s22 = sphi 0, %s29
      %s23 = sphi 0, %s21
      %s24 = sphi 0, %s22
      %s25 = sphi 0, %s23
      %s26 = sphi 0, %s24
      %s36 = sphi 0, %s38
      %s39 = sphi 0, %s36
      %s40 = sphi 0, %s39
      %s56 = sphi 0, %s40
      %s62 = sphi 0, %s64
      %s65 = sphi 0, %s62
      %s66 = sphi 0, %s65
      %s82 = sphi 0, %s66
      %s88 = sphi 0, %s90
      %s91 = sphi 0, %s88
      %s92 = sphi 0, %s91
      %s108 = sphi 0, %s92
      %s114 = sphi 0, %s116
      %s117 = sphi 0, %s114
      %s118 = sphi 0, %s117
      %s134 = sphi 0, %s118
    $region4: #{tpu_custom_call.1} parent=1 // loop_header_branch
      %17 = sbr.rel (%p15) target = $region8
    $region5: #{tpu_custom_call.1} parent=1 // loop_body
      %s19 = ssub.s32 %s14, 1
      %s20 = ssub.s32 %s14, 2
      %s27 = sadd.s32 1, %s22
      %p28 = scmp.ge.s32.totalorder %s27, 2
      %s29 = scalar_select %p28, 0, %s27
      %s30 = sadd.s32 1, %s21
      %s31 = scalar_select %p28, %s30, %s21
      %p32 = scmp.ge.s32.totalorder %s31, 1
      %s33 = scalar_select %p32, 0, %s31
      %s34 = ssub.s32 %s21, %s33
      %p35 = scmp.eq.s32.totalorder %s34, 0
      %s37 = sadd.s32 %s36, 1
      %s38 = scalar_select %p35, %s36, %s37
      %p41 = pneg %p35
      %p42 = scmp.eq.s32.totalorder %s14, 1
      %p43 = por %p41, %p42
      %p44 = scmp.ne.s32.totalorder %s36, %s39
      %p45 = scmp.eq.s32.totalorder %s14, 0
      %p46 = por %p44, %p45
      %p47 = scmp.ne.s32.totalorder %s36, %s39
      %p48 = scmp.eq.s32.totalorder %s19, 1
      %p49 = por %p47, %p48
      %p50 = scmp.ne.s32.totalorder %s39, %s40
      %p51 = scmp.eq.s32.totalorder %s19, 0
      %p52 = por %p50, %p51
      %p53 = scmp.ne.s32.totalorder %s39, %s40
      %p54 = scmp.eq.s32.totalorder %s20, 1
      %p55 = por %p53, %p54
      %p57 = scmp.ne.s32.totalorder %s40, %s56
      %p58 = scmp.eq.s32.totalorder %s20, 0
      %p59 = por %p57, %p58
      %s60 = ssub.s32 %s22, %s29
      %p61 = scmp.eq.s32.totalorder %s60, 0
      %s63 = sadd.s32 %s62, 1
      %s64 = scalar_select %p61, %s62, %s63
      %p67 = pneg %p61
      %p68 = scmp.eq.s32.totalorder %s14, 1
      %p69 = por %p67, %p68
      %p70 = scmp.ne.s32.totalorder %s62, %s65
      %p71 = scmp.eq.s32.totalorder %s14, 0
      %p72 = por %p70, %p71
      %p73 = scmp.ne.s32.totalorder %s62, %s65
      %p74 = scmp.eq.s32.totalorder %s19, 1
      %p75 = por %p73, %p74
      %p76 = scmp.ne.s32.totalorder %s65, %s66
      %p77 = scmp.eq.s32.totalorder %s19, 0
      %p78 = por %p76, %p77
      %p79 = scmp.ne.s32.totalorder %s65, %s66
      %p80 = scmp.eq.s32.totalorder %s20, 1
      %p81 = por %p79, %p80
      %p83 = scmp.ne.s32.totalorder %s66, %s82
      %p84 = scmp.eq.s32.totalorder %s20, 0
      %p85 = por %p83, %p84
      %s86 = ssub.s32 %s22, %s29
      %p87 = scmp.eq.s32.totalorder %s86, 0
      %s89 = sadd.s32 %s88, 1
      %s90 = scalar_select %p87, %s88, %s89
      %p93 = pneg %p87
      %p94 = scmp.eq.s32.totalorder %s14, 1
      %p95 = por %p93, %p94
      %p96 = scmp.ne.s32.totalorder %s88, %s91
      %p97 = scmp.eq.s32.totalorder %s14, 0
      %p98 = por %p96, %p97
      %p99 = scmp.ne.s32.totalorder %s88, %s91
      %p100 = scmp.eq.s32.totalorder %s19, 1
      %p101 = por %p99, %p100
      %p102 = scmp.ne.s32.totalorder %s91, %s92
      %p103 = scmp.eq.s32.totalorder %s19, 0
      %p104 = por %p102, %p103
      %p105 = scmp.ne.s32.totalorder %s91, %s92
      %p106 = scmp.eq.s32.totalorder %s20, 1
      %p107 = por %p105, %p106
      %p109 = scmp.ne.s32.totalorder %s92, %s108
      %p110 = scmp.eq.s32.totalorder %s20, 0
      %p111 = por %p109, %p110
      %s112 = ssub.s32 %s21, %s33
      %p113 = scmp.eq.s32.totalorder %s112, 0
      %s115 = sadd.s32 %s114, 1
      %s116 = scalar_select %p113, %s114, %s115
      %p119 = pneg %p113
      %p120 = scmp.eq.s32.totalorder %s14, 1
      %p121 = por %p119, %p120
      %p122 = scmp.ne.s32.totalorder %s114, %s117
      %p123 = scmp.eq.s32.totalorder %s14, 0
      %p124 = por %p122, %p123
      %p125 = scmp.ne.s32.totalorder %s114, %s117
      %p126 = scmp.eq.s32.totalorder %s19, 1
      %p127 = por %p125, %p126
      %p128 = scmp.ne.s32.totalorder %s117, %s118
      %p129 = scmp.eq.s32.totalorder %s19, 0
      %p130 = por %p128, %p129
      %p131 = scmp.ne.s32.totalorder %s117, %s118
      %p132 = scmp.eq.s32.totalorder %s20, 1
      %p133 = por %p131, %p132
      %p135 = scmp.ne.s32.totalorder %s118, %s134
      %p136 = scmp.eq.s32.totalorder %s20, 0
      %p137 = por %p135, %p136
      %p138 = scmp.le.s32.totalorder 1, %s14
      %p139 = scmp.lt.s32.totalorder %s14, 3
      %p140 = pnand %p138, %p139
      %p141 = pneg %p140
      // Predicated region
      $region9: #{tpu_custom_call.1} parent=5 // pred_check
        _
      $region10: #{tpu_custom_call.1} parent=5 // pred_check_branch
        %143 = sbr.rel (%p140) target = $region12
      $region11: #{tpu_custom_call.1} parent=5 // pred_region
        %s144 = ssub.s32 %s14, 1
        // Predicated region
        $region13: #{tpu_custom_call.1} parent=11 // pred_check
          %p145 = pneg %p52
        $region14: #{tpu_custom_call.1} parent=11 // pred_check_branch
          %147 = sbr.rel (%p145) target = $region16
        $region15: #{tpu_custom_call.1} parent=11 // pred_region
          %s148 = smul.u32 2, %s23
          %s150 = ssub.s32 256, 256
          %151 = vsyncadd [#allocation5], %s150
          %s152 = smul.addr %s148, 128
          %s153 = scalar_lea.hbm %s0, %s152
          %s154 = sshll.u32 [#allocation4], 4
          %s155 = int_to_ptr.vmem [resolvable:$true] %s154
          %160 = dma.hbm_to_vmem [thread:$0]  %s153, 256, %s155, [#allocation5], 128, 128, 8
        $region16: #{tpu_custom_call.1} parent=11 // pred_fallthru
          _
      $region12: #{tpu_custom_call.1} parent=5 // pred_fallthru
        _
      %p161 = scmp.lt.s32.totalorder %s14, 2
      // Predicated region
      $region17: #{tpu_custom_call.1} parent=5 // pred_check
        %p162 = pneg %p161
      $region18: #{tpu_custom_call.1} parent=5 // pred_check_branch
        %164 = sbr.rel (%p162) target = $region20
      $region19: #{tpu_custom_call.1} parent=5 // pred_region
        // Predicated region
        $region21: #{tpu_custom_call.1} parent=19 // pred_check
          %p165 = pneg %p72
        $region22: #{tpu_custom_call.1} parent=19 // pred_check_branch
          %167 = sbr.rel (%p165) target = $region24
        $region23: #{tpu_custom_call.1} parent=19 // pred_region
          %s168 = sand.u32 %s14, 1
          %s169 = scalar_lea.sflag [#allocation8], %s168
          %s170 = sand.u32 %s62, 1
          %s171 = smul.addr %s170, 128
          %s172 = scalar_lea.vmem [#allocation7], %s171
          %s173 = smul.u32 4, %s22
          %s175 = ssub.s32 2048, 2048
          %176 = vsyncadd %s169, %s175
          %s177 = smul.addr %s173, 128
          %s178 = scalar_lea.hbm %s1, %s177
          %s179 = sshll.u32 %s172, 4
          %s180 = int_to_ptr.vmem [resolvable:$true] %s179
          %185 = dma.hbm_to_vmem [thread:$0]  %s178, 2048, %s180, %s169, 1024, 512, 32
        $region24: #{tpu_custom_call.1} parent=19 // pred_fallthru
          _
        // Predicated region
        $region25: #{tpu_custom_call.1} parent=19 // pred_check
          %p186 = pneg %p98
        $region26: #{tpu_custom_call.1} parent=19 // pred_check_branch
          %188 = sbr.rel (%p186) target = $region28
        $region27: #{tpu_custom_call.1} parent=19 // pred_region
          %s189 = sand.u32 %s14, 1
          %s190 = scalar_lea.sflag [#allocation8], %s189
          %s191 = sand.u32 %s88, 1
          %s192 = smul.addr %s191, 4
          %s193 = scalar_lea.vmem [#allocation9], %s192
          %s194 = smul.u32 4, %s22
          %s196 = ssub.s32 64, 64
          %197 = vsyncadd %s190, %s196
          %s198 = smul.addr %s194, 16
          %s199 = scalar_lea.hbm %s2, %s198
          %s201 = sshll.u32 %s193, 4
          %s202 = int_to_ptr.vmem [resolvable:$true] %s201
          %204 = dma.hbm_to_vmem [thread:$0]  %s199, 64, %s202, %s190
        $region28: #{tpu_custom_call.1} parent=19 // pred_fallthru
          _
      $region20: #{tpu_custom_call.1} parent=5 // pred_fallthru
        _
      %p205 = scmp.le.s32.totalorder 1, %s14
      %p206 = scmp.lt.s32.totalorder %s14, 3
      %p207 = pnand %p205, %p206
      %p208 = pneg %p207
      // Predicated region
      $region29: #{tpu_custom_call.1} parent=5 // pred_check
        _
      $region30: #{tpu_custom_call.1} parent=5 // pred_check_branch
        %210 = sbr.rel (%p207) target = $region32
      $region31: #{tpu_custom_call.1} parent=5 // pred_region
        %s211 = ssub.s32 %s14, 1
        // Predicated region
        $region33: #{tpu_custom_call.1} parent=31 // pred_check
          %p212 = pneg %p52
        $region34: #{tpu_custom_call.1} parent=31 // pred_check_branch
          %214 = sbr.rel (%p212) target = $region36
        $region35: #{tpu_custom_call.1} parent=31 // pred_region
          %215 = dma.done [#allocation5], 256
        $region36: #{tpu_custom_call.1} parent=31 // pred_fallthru
          _
        %s216 = sand.u32 %s19, 1
        %s217 = scalar_lea.sflag [#allocation8], %s216
        %s218 = sand.u32 %s65, 1
        %s219 = smul.addr %s218, 128
        %s220 = scalar_lea.vmem [#allocation7], %s219
        // Predicated region
        $region37: #{tpu_custom_call.1} parent=31 // pred_check
          %p221 = pneg %p78
        $region38: #{tpu_custom_call.1} parent=31 // pred_check_branch
          %223 = sbr.rel (%p221) target = $region40
        $region39: #{tpu_custom_call.1} parent=31 // pred_region
          %224 = dma.done %s217, 2048
        $region40: #{tpu_custom_call.1} parent=31 // pred_fallthru
          _
        %s225 = sand.u32 %s19, 1
        %s226 = scalar_lea.sflag [#allocation8], %s225
        %s227 = sand.u32 %s91, 1
        %s228 = smul.addr %s227, 4
        %s229 = scalar_lea.vmem [#allocation9], %s228
        // Predicated region
        $region41: #{tpu_custom_call.1} parent=31 // pred_check
          %p230 = pneg %p104
        $region42: #{tpu_custom_call.1} parent=31 // pred_check_branch
          %232 = sbr.rel (%p230) target = $region44
        $region43: #{tpu_custom_call.1} parent=31 // pred_region
          %233 = dma.done %s226, 64
        $region44: #{tpu_custom_call.1} parent=31 // pred_fallthru
          _
        %p234 = pneg %p52
        %p235 = pneg %p49
        %s236 = sand.u32 %s19, 1
        %s237 = scalar_lea.sflag [#allocation8], %s236
        %s238 = sand.u32 %s65, 1
        %s239 = smul.addr %s238, 128
        %s240 = scalar_lea.vmem [#allocation7], %s239
        %p241 = pneg %p78
        %p242 = pneg %p75
        %s243 = sand.u32 %s19, 1
        %s244 = scalar_lea.sflag [#allocation8], %s243
        %s245 = sand.u32 %s91, 1
        %s246 = smul.addr %s245, 4
        %s247 = scalar_lea.vmem [#allocation9], %s246
        %p248 = pneg %p104
        %p249 = pneg %p101
        %p250 = pneg %p130
        %p251 = pneg %p127
        %s252 = smul.u32 2, %s23
        %s253 = smul.u32 4, %s24
        %s254 = smul.u32 4, %s24
        %s255 = smul.u32 2, %s23
        %p256 = scmp.eq.s32.totalorder %s24, 0
        // Predicated region
        $region45: #{tpu_custom_call.1} parent=31 // pred_check
          %p257 = pneg %p256
        $region46: #{tpu_custom_call.1} parent=31 // pred_check_branch
          %259 = sbr.rel (%p257) target = $region48
        $region47: #{tpu_custom_call.1} parent=31 // pred_region
          %vm260 = vcmask 7168
          %261 = vst.msk [vmem:[#allocation2] sm:$0xff] %vm260, -inf
          %262 = vst.msk [vmem:[#allocation2 + $0x8] sm:$0xff] %vm260, -inf
          %263 = vst.msk [vmem:[#allocation3] sm:$0xff] %vm260, 0.0
          %264 = vst.msk [vmem:[#allocation3 + $0x8] sm:$0xff] %vm260, 0.0
        $region48: #{tpu_custom_call.1} parent=31 // pred_fallthru
          _
        %v265 = vld [vmem:[#allocation4] sm:$0xff]
        %v266 = vld [vmem:[#allocation4 + $0x8] sm:$0xff]
        %v267 = vld [vmem:[%s220] sm:$0xff]
        %v268 = vld [vmem:[%s220 + $0x8] sm:$0xff]
        %v269 = vld [vmem:[%s220 + $0x10] sm:$0xff]
        %v270 = vld [vmem:[%s220 + $0x18] sm:$0xff]
        %v271 = vld [vmem:[%s220 + $0x20] sm:$0xff]
        %v272 = vld [vmem:[%s220 + $0x28] sm:$0xff]
        %v273 = vld [vmem:[%s220 + $0x30] sm:$0xff]
        %v274 = vld [vmem:[%s220 + $0x38] sm:$0xff]
        %v275 = vld [vmem:[%s220 + $0x40] sm:$0xff]
        %v276 = vld [vmem:[%s220 + $0x48] sm:$0xff]
        %v277 = vld [vmem:[%s220 + $0x50] sm:$0xff]
        %v278 = vld [vmem:[%s220 + $0x58] sm:$0xff]
        %v279 = vld [vmem:[%s220 + $0x60] sm:$0xff]
        %v280 = vld [vmem:[%s220 + $0x68] sm:$0xff]
        %v281 = vld [vmem:[%s220 + $0x70] sm:$0xff]
        %v282 = vld [vmem:[%s220 + $0x78] sm:$0xff]
        %v283 = vld [vmem:[%s229] sm:$0xf]
        %v285 = vlaneseq
        %v286 = vshrl.u32 %v285, 7
        %v287 = vsub.s32 0, %v286
        %v288 = vrot.slane %v283, %v287
        %v289 = vlaneseq
        %v290 = vshrl.u32 %v289, 7
        %v291 = vsub.s32 1, %v290
        %v292 = vrot.slane %v283, %v291
        %v293 = vlaneseq
        %v294 = vshrl.u32 %v293, 7
        %v295 = vsub.s32 2, %v294
        %v296 = vrot.slane %v283, %v295
        %v297 = vlaneseq
        %v298 = vshrl.u32 %v297, 7
        %v299 = vsub.s32 3, %v298
        %v300 = vrot.slane %v283, %v299
        %vm305 = vcmask 261120
        %v307 = vsel %vm305, %v265, 0
        %v310 = vsel %vm305, %v266, 0
        %312 = vmatprep.subr.mxu0 %v268
        %313 = vmatpush1.msra.mxu0 %v267
        %314 = vmatprep.subr.mxu0 %v272
        %315 = vmatpush1.msra.mxu0 %v271
        %316 = vmatprep.subr.mxu0 %v276
        %317 = vmatpush1.msra.mxu0 %v275
        %318 = vmatprep.subr.mxu0 %v280
        %319 = vmatpush1.msra.mxu0 %v279
        %320 = vmatprep.subr.mxu0 0.0
        %321 = vmatpush1.msra.mxu0 0.0
        %322 = vmatprep.subr.mxu0 0.0
        %323 = vmatpush1.msra.mxu0 0.0
        %324 = vmatprep.subr.mxu0 0.0
        %325 = vmatpush1.msra.mxu0 0.0
        %326 = vmatprep.subr.mxu0 0.0
        %327 = vmatpush1.msra.mxu0 0.0
        %328 = vmatprep.subr.mxu0 0.0
        %329 = vmatpush1.msra.mxu0 0.0
        %330 = vmatprep.subr.mxu0 0.0
        %331 = vmatpush1.msra.mxu0 0.0
        %332 = vmatprep.subr.mxu0 0.0
        %333 = vmatpush1.msra.mxu0 0.0
        %334 = vmatprep.subr.mxu0 0.0
        %335 = vmatpush1.msra.mxu0 0.0
        %336 = vmatprep.subr.mxu0 0.0
        %337 = vmatpush1.msra.mxu0 0.0
        %338 = vmatprep.subr.mxu0 0.0
        %339 = vmatpush1.msra.mxu0 0.0
        %340 = vmatprep.subr.mxu0 0.0
        %341 = vmatpush1.msra.mxu0 0.0
        %342 = vmatprep.subr.mxu0 0.0
        %343 = vmatpush1.msra.mxu0 0.0
        %344 = vmatprep.subr.mxu0 0.0
        %345 = vmatpush1.msra.mxu0 0.0
        %346 = vmatprep.subr.mxu0 0.0
        %347 = vmatpush1.msra.mxu0 0.0
        %348 = vmatprep.subr.mxu0 0.0
        %349 = vmatpush1.msra.mxu0 0.0
        %350 = vmatprep.subr.mxu0 0.0
        %351 = vmatpush1.msra.mxu0 0.0
        %352 = vmatprep.subr.mxu0 0.0
        %353 = vmatpush1.msra.mxu0 0.0
        %354 = vmatprep.subr.mxu0 0.0
        %355 = vmatpush1.msra.mxu0 0.0
        %356 = vmatprep.subr.mxu0 0.0
        %357 = vmatpush1.msra.mxu0 0.0
        %358 = vmatprep.subr.mxu0 0.0
        %359 = vmatpush1.msra.mxu0 0.0
        %360 = vmatprep.subr.mxu0 0.0
        %361 = vmatpush1.msra.mxu0 0.0
        %362 = vmatprep.subr.mxu0 0.0
        %363 = vmatpush1.msra.mxu0 0.0
        %364 = vmatprep.subr.mxu0 0.0
        %365 = vmatpush1.msra.mxu0 0.0
        %366 = vmatprep.subr.mxu0 0.0
        %367 = vmatpush1.msra.mxu0 0.0
        %368 = vmatprep.subr.mxu0 0.0
        %369 = vmatpush1.msra.mxu0 0.0
        %370 = vmatprep.subr.mxu0 0.0
        %371 = vmatpush1.msra.mxu0 0.0
        %372 = vmatprep.subr.mxu0 0.0
        %373 = vmatpush1.msra.mxu0 0.0
        %374 = vmatprep.subr.mxu0 0.0
        %375 = vmatpush1.msra.mxu0 0.0
        %376 = vmatprep.mubr.f32.mxu0 0.0
        %377 = vmatmul.mubr.f32.gmra.mrb[0].mxu0 %v307
        %v378 = vpop.f32.mrb[0].mxu0
        %v379 = vadd.f32 %v288, %v378
        %v380 = vpop.f32.mrb[0].mxu0
        %v381 = vadd.f32 %v292, %v380
        %382 = vmatprep.mubr.f32.mxu0 0.0
        %383 = vmatmul.mubr.f32.gmra.mrb[0].mxu0 %v310
        %v384 = vpop.f32.mrb[0].mxu0
        %v385 = vadd.f32 %v288, %v384
        %v386 = vpop.f32.mrb[0].mxu0
        %v387 = vadd.f32 %v292, %v386
        %388 = vdwg.mxu0
        %389 = vmatprep.subr.mxu0 %v270
        %390 = vmatpush1.msra.mxu0 %v269
        %391 = vmatprep.subr.mxu0 %v274
        %392 = vmatpush1.msra.mxu0 %v273
        %393 = vmatprep.subr.mxu0 %v278
        %394 = vmatpush1.msra.mxu0 %v277
        %395 = vmatprep.subr.mxu0 %v282
        %396 = vmatpush1.msra.mxu0 %v281
        %397 = vmatprep.subr.mxu0 0.0
        %398 = vmatpush1.msra.mxu0 0.0
        %399 = vmatprep.subr.mxu0 0.0
        %400 = vmatpush1.msra.mxu0 0.0
        %401 = vmatprep.subr.mxu0 0.0
        %402 = vmatpush1.msra.mxu0 0.0
        %403 = vmatprep.subr.mxu0 0.0
        %404 = vmatpush1.msra.mxu0 0.0
        %405 = vmatprep.subr.mxu0 0.0
        %406 = vmatpush1.msra.mxu0 0.0
        %407 = vmatprep.subr.mxu0 0.0
        %408 = vmatpush1.msra.mxu0 0.0
        %409 = vmatprep.subr.mxu0 0.0
        %410 = vmatpush1.msra.mxu0 0.0
        %411 = vmatprep.subr.mxu0 0.0
        %412 = vmatpush1.msra.mxu0 0.0
        %413 = vmatprep.subr.mxu0 0.0
        %414 = vmatpush1.msra.mxu0 0.0
        %415 = vmatprep.subr.mxu0 0.0
        %416 = vmatpush1.msra.mxu0 0.0
        %417 = vmatprep.subr.mxu0 0.0
        %418 = vmatpush1.msra.mxu0 0.0
        %419 = vmatprep.subr.mxu0 0.0
        %420 = vmatpush1.msra.mxu0 0.0
        %421 = vmatprep.subr.mxu0 0.0
        %422 = vmatpush1.msra.mxu0 0.0
        %423 = vmatprep.subr.mxu0 0.0
        %424 = vmatpush1.msra.mxu0 0.0
        %425 = vmatprep.subr.mxu0 0.0
        %426 = vmatpush1.msra.mxu0 0.0
        %427 = vmatprep.subr.mxu0 0.0
        %428 = vmatpush1.msra.mxu0 0.0
        %429 = vmatprep.subr.mxu0 0.0
        %430 = vmatpush1.msra.mxu0 0.0
        %431 = vmatprep.subr.mxu0 0.0
        %432 = vmatpush1.msra.mxu0 0.0
        %433 = vmatprep.subr.mxu0 0.0
        %434 = vmatpush1.msra.mxu0 0.0
        %435 = vmatprep.subr.mxu0 0.0
        %436 = vmatpush1.msra.mxu0 0.0
        %437 = vmatprep.subr.mxu0 0.0
        %438 = vmatpush1.msra.mxu0 0.0
        %439 = vmatprep.subr.mxu0 0.0
        %440 = vmatpush1.msra.mxu0 0.0
        %441 = vmatprep.subr.mxu0 0.0
        %442 = vmatpush1.msra.mxu0 0.0
        %443 = vmatprep.subr.mxu0 0.0
        %444 = vmatpush1.msra.mxu0 0.0
        %445 = vmatprep.subr.mxu0 0.0
        %446 = vmatpush1.msra.mxu0 0.0
        %447 = vmatprep.subr.mxu0 0.0
        %448 = vmatpush1.msra.mxu0 0.0
        %449 = vmatprep.subr.mxu0 0.0
        %450 = vmatpush1.msra.mxu0 0.0
        %451 = vmatprep.subr.mxu0 0.0
        %452 = vmatpush1.msra.mxu0 0.0
        %453 = vmatprep.mubr.f32.mxu0 0.0
        %454 = vmatmul.mubr.f32.gmra.mrb[0].mxu0 %v307
        %v455 = vpop.f32.mrb[0].mxu0
        %v456 = vadd.f32 %v296, %v455
        %v457 = vpop.f32.mrb[0].mxu0
        %v458 = vadd.f32 %v300, %v457
        %459 = vmatprep.mubr.f32.mxu0 0.0
        %460 = vmatmul.mubr.f32.gmra.mrb[0].mxu0 %v310
        %v461 = vpop.f32.mrb[0].mxu0
        %v462 = vadd.f32 %v296, %v461
        %v463 = vpop.f32.mrb[0].mxu0
        %v464 = vadd.f32 %v300, %v463
        %465 = vdwg.mxu0
        // Predicated region
        $region49: #{tpu_custom_call.1} parent=31 // pred_check
          %p466 = pneg %p256
        $region50: #{tpu_custom_call.1} parent=31 // pred_check_branch
          %468 = sbr.rel (%p466) target = $region52
        $region51: #{tpu_custom_call.1} parent=31 // pred_region
          %469 = vst [vmem:[#allocation10] sm:$0xff] %v379
          %470 = vst [vmem:[#allocation10 + $0x8] sm:$0xff] %v381
          %471 = vst [vmem:[#allocation10 + $0x10] sm:$0xff] %v456
          %472 = vst [vmem:[#allocation10 + $0x18] sm:$0xff] %v458
          %473 = vst [vmem:[#allocation10 + $0x40] sm:$0xff] %v385
          %474 = vst [vmem:[#allocation10 + $0x48] sm:$0xff] %v387
          %475 = vst [vmem:[#allocation10 + $0x50] sm:$0xff] %v462
          %476 = vst [vmem:[#allocation10 + $0x58] sm:$0xff] %v464
        $region52: #{tpu_custom_call.1} parent=31 // pred_fallthru
          _
        %p477 = scmp.eq.s32.totalorder %s24, 1
        // Predicated region
        $region53: #{tpu_custom_call.1} parent=31 // pred_check
          %p478 = pneg %p477
        $region54: #{tpu_custom_call.1} parent=31 // pred_check_branch
          %480 = sbr.rel (%p478) target = $region56
        $region55: #{tpu_custom_call.1} parent=31 // pred_region
          %481 = vst [vmem:[#allocation10 + $0x20] sm:$0xff] %v379
          %482 = vst [vmem:[#allocation10 + $0x28] sm:$0xff] %v381
          %483 = vst [vmem:[#allocation10 + $0x30] sm:$0xff] %v456
          %484 = vst [vmem:[#allocation10 + $0x38] sm:$0xff] %v458
          %485 = vst [vmem:[#allocation10 + $0x60] sm:$0xff] %v385
          %486 = vst [vmem:[#allocation10 + $0x68] sm:$0xff] %v387
          %487 = vst [vmem:[#allocation10 + $0x70] sm:$0xff] %v462
          %488 = vst [vmem:[#allocation10 + $0x78] sm:$0xff] %v464
        $region56: #{tpu_custom_call.1} parent=31 // pred_fallthru
          _
        %v489 = vld [vmem:[#allocation2] sm:$0xff]
        %v490 = vld [vmem:[#allocation2 + $0x8] sm:$0xff]
        %v491 = vmax.f32 %v379, %v456
        %v492 = vmax.f32 %v381, %v458
        %v493 = vmax.f32 %v491, %v492
        %494 = vmax.xlane.f32.xlu0 %v493
        %v495 = vpop.xlane.xlu0 %494
        %v496 = vmax.f32 %v385, %v462
        %v497 = vmax.f32 %v387, %v464
        %v498 = vmax.f32 %v496, %v497
        %499 = vmax.xlane.f32.xlu0 %v498
        %v500 = vpop.xlane.xlu0 %499
        %v501 = vmax.f32 %v489, %v495
        %v502 = vmax.f32 %v490, %v500
        %v503 = vsub.f32 %v489, %v501
        %v504 = vsub.f32 %v490, %v502
        %v505 = vmul.f32 %v503, 1.442695
        %v506 = vpow.pop %v505
        %v507 = vmul.f32 %v504, 1.442695
        %v508 = vpow.pop %v507
        %v509 = vld [vmem:[#allocation3] sm:$0xff]
        %v510 = vld [vmem:[#allocation3 + $0x8] sm:$0xff]
        %v511 = vmul.f32 %v506, %v509
        %v512 = vmul.f32 %v508, %v510
        %514 = vset.pattern.permute.xlu0 0
        %515 = vperm.xlu0 %514, %v501
        %v516 = vpop.permute.xlu0 %515
        %519 = vset.pattern.permute.xlu0 0
        %520 = vperm.xlu0 %519, %v502
        %v521 = vpop.permute.xlu0 %520
        %v523 = vsub.f32 %v379, %v516
        %v524 = vsub.f32 %v381, %v516
        %v525 = vsub.f32 %v456, %v516
        %v526 = vsub.f32 %v458, %v516
        %v527 = vsub.f32 %v385, %v521
        %v528 = vsub.f32 %v387, %v521
        %v529 = vsub.f32 %v462, %v521
        %v530 = vsub.f32 %v464, %v521
        %v531 = vmul.f32 %v523, 1.442695
        %v532 = vpow.pop %v531
        %v533 = vmul.f32 %v524, 1.442695
        %v534 = vpow.pop %v533
        %v535 = vmul.f32 %v525, 1.442695
        %v536 = vpow.pop %v535
        %v537 = vmul.f32 %v526, 1.442695
        %v538 = vpow.pop %v537
        %v539 = vmul.f32 %v527, 1.442695
        %v540 = vpow.pop %v539
        %v541 = vmul.f32 %v528, 1.442695
        %v542 = vpow.pop %v541
        %v543 = vmul.f32 %v529, 1.442695
        %v544 = vpow.pop %v543
        %v545 = vmul.f32 %v530, 1.442695
        %v546 = vpow.pop %v545
        %v547 = vadd.f32 %v532, %v534
        %v548 = vadd.f32 %v547, %v536
        %v549 = vadd.f32 %v548, %v538
        %550 = vadd.xlane.f32.xlu0 %v549
        %v551 = vpop.xlane.xlu0 %550
        %v552 = vadd.f32 %v540, %v542
        %v553 = vadd.f32 %v552, %v544
        %v554 = vadd.f32 %v553, %v546
        %555 = vadd.xlane.f32.xlu0 %v554
        %v556 = vpop.xlane.xlu0 %555
        %v557 = vadd.f32 %v511, %v551
        %v558 = vadd.f32 %v512, %v556
        %vm559 = vcmask 7168
        %560 = vst.msk [vmem:[#allocation3] sm:$0xff] %vm559, %v557
        %561 = vst.msk [vmem:[#allocation3 + $0x8] sm:$0xff] %vm559, %v558
        %562 = vst.msk [vmem:[#allocation2] sm:$0xff] %vm559, %v501
        %563 = vst.msk [vmem:[#allocation2 + $0x8] sm:$0xff] %vm559, %v502
        // Predicated region
        $region57: #{tpu_custom_call.1} parent=31 // pred_check
          %p564 = pneg %p477
        $region58: #{tpu_custom_call.1} parent=31 // pred_check_branch
          %566 = sbr.rel (%p564) target = $region60
        $region59: #{tpu_custom_call.1} parent=31 // pred_region
          %v567 = vld [vmem:[#allocation2] sm:$0xff]
          %v568 = vld [vmem:[#allocation2 + $0x8] sm:$0xff]
          %v569 = vld [vmem:[#allocation3] sm:$0xff]
          %v570 = vld [vmem:[#allocation3 + $0x8] sm:$0xff]
          %v571 = vlog2.pop %v569
          %v572 = vmul.f32 %v571, 0.6931472
          %v573 = vlog2.pop %v570
          %v574 = vmul.f32 %v573, 0.6931472
          %v575 = vadd.f32 %v567, %v572
          %v576 = vadd.f32 %v568, %v574
          %v577 = vld [vmem:[#allocation10] sm:$0xff]
          %v578 = vld [vmem:[#allocation10 + $0x8] sm:$0xff]
          %v579 = vld [vmem:[#allocation10 + $0x10] sm:$0xff]
          %v580 = vld [vmem:[#allocation10 + $0x18] sm:$0xff]
          %v581 = vld [vmem:[#allocation10 + $0x20] sm:$0xff]
          %v582 = vld [vmem:[#allocation10 + $0x28] sm:$0xff]
          %v583 = vld [vmem:[#allocation10 + $0x30] sm:$0xff]
          %v584 = vld [vmem:[#allocation10 + $0x38] sm:$0xff]
          %v585 = vld [vmem:[#allocation10 + $0x40] sm:$0xff]
          %v586 = vld [vmem:[#allocation10 + $0x48] sm:$0xff]
          %v587 = vld [vmem:[#allocation10 + $0x50] sm:$0xff]
          %v588 = vld [vmem:[#allocation10 + $0x58] sm:$0xff]
          %v589 = vld [vmem:[#allocation10 + $0x60] sm:$0xff]
          %v590 = vld [vmem:[#allocation10 + $0x68] sm:$0xff]
          %v591 = vld [vmem:[#allocation10 + $0x70] sm:$0xff]
          %v592 = vld [vmem:[#allocation10 + $0x78] sm:$0xff]
          %594 = vset.pattern.permute.xlu0 0
          %595 = vperm.xlu0 %594, %v575
          %v596 = vpop.permute.xlu0 %595
          %599 = vset.pattern.permute.xlu0 0
          %600 = vperm.xlu0 %599, %v576
          %v601 = vpop.permute.xlu0 %600
          %v603 = vsub.f32 %v577, %v596
          %v604 = vsub.f32 %v578, %v596
          %v605 = vsub.f32 %v579, %v596
          %v606 = vsub.f32 %v580, %v596
          %v607 = vsub.f32 %v581, %v596
          %v608 = vsub.f32 %v582, %v596
          %v609 = vsub.f32 %v583, %v596
          %v610 = vsub.f32 %v584, %v596
          %v611 = vsub.f32 %v585, %v601
          %v612 = vsub.f32 %v586, %v601
          %v613 = vsub.f32 %v587, %v601
          %v614 = vsub.f32 %v588, %v601
          %v615 = vsub.f32 %v589, %v601
          %v616 = vsub.f32 %v590, %v601
          %v617 = vsub.f32 %v591, %v601
          %v618 = vsub.f32 %v592, %v601
          %619 = vst [vmem:[#allocation10] sm:$0xff] %v603
          %620 = vst [vmem:[#allocation10 + $0x8] sm:$0xff] %v604
          %621 = vst [vmem:[#allocation10 + $0x10] sm:$0xff] %v605
          %622 = vst [vmem:[#allocation10 + $0x18] sm:$0xff] %v606
          %623 = vst [vmem:[#allocation10 + $0x20] sm:$0xff] %v607
          %624 = vst [vmem:[#allocation10 + $0x28] sm:$0xff] %v608
          %625 = vst [vmem:[#allocation10 + $0x30] sm:$0xff] %v609
          %626 = vst [vmem:[#allocation10 + $0x38] sm:$0xff] %v610
          %627 = vst [vmem:[#allocation10 + $0x40] sm:$0xff] %v611
          %628 = vst [vmem:[#allocation10 + $0x48] sm:$0xff] %v612
          %629 = vst [vmem:[#allocation10 + $0x50] sm:$0xff] %v613
          %630 = vst [vmem:[#allocation10 + $0x58] sm:$0xff] %v614
          %631 = vst [vmem:[#allocation10 + $0x60] sm:$0xff] %v615
          %632 = vst [vmem:[#allocation10 + $0x68] sm:$0xff] %v616
          %633 = vst [vmem:[#allocation10 + $0x70] sm:$0xff] %v617
          %634 = vst [vmem:[#allocation10 + $0x78] sm:$0xff] %v618
        $region60: #{tpu_custom_call.1} parent=31 // pred_fallthru
          _
        // Predicated region
        $region61: #{tpu_custom_call.1} parent=31 // pred_check
          %p635 = pneg %p127
        $region62: #{tpu_custom_call.1} parent=31 // pred_check_branch
          %637 = sbr.rel (%p635) target = $region64
        $region63: #{tpu_custom_call.1} parent=31 // pred_region
          %s638 = smul.u32 2, %s23
          %s640 = ssub.s32 2048, 2048
          %641 = vsyncadd [#allocation6], %s640
          %s642 = smul.addr %s638, 8
          %s643 = smul.addr %s642, 128
          %s644 = scalar_lea.hbm %s3, %s643
          %s645 = sshll.u32 [#allocation10], 4
          %s646 = int_to_ptr.vmem [resolvable:$true] %s645
          %651 = dma.vmem_to_hbm [thread:$0]  %s646, 2048, %s644, [#allocation6], 1024, 1024, 64
        $region64: #{tpu_custom_call.1} parent=31 // pred_fallthru
          _
        // Predicated region
        $region65: #{tpu_custom_call.1} parent=31 // pred_check
          %p652 = pneg %p127
        $region66: #{tpu_custom_call.1} parent=31 // pred_check_branch
          %654 = sbr.rel (%p652) target = $region68
        $region67: #{tpu_custom_call.1} parent=31 // pred_region
          %655 = dma.done [#allocation6], 2048
        $region68: #{tpu_custom_call.1} parent=31 // pred_fallthru
          _
      $region32: #{tpu_custom_call.1} parent=5 // pred_fallthru
        _
      %p656 = scmp.le.s32.totalorder 2, %s14
      // Predicated region
      $region69: #{tpu_custom_call.1} parent=5 // pred_check
        %p657 = pneg %p656
      $region70: #{tpu_custom_call.1} parent=5 // pred_check_branch
        %659 = sbr.rel (%p657) target = $region72
      $region71: #{tpu_custom_call.1} parent=5 // pred_region
        %s660 = ssub.s32 %s14, 2
      $region72: #{tpu_custom_call.1} parent=5 // pred_fallthru
        _
    $region6: #{tpu_custom_call.1} parent=1 // loop_footer
      %s18 = sadd.s32 1, %s14
    $region7: #{tpu_custom_call.1} parent=1 // loop_footer_branch
      %13 = sbr.rel target = $region3
    $region8: #{tpu_custom_call.1} parent=1 // loop_exit
      _
    %661 = vsyncpa [#allocation5], 1
    %s662 = scalar_lea.sflag [#allocation5], 1
    %663 = vsyncpa %s662, 1
    %664 = vsyncpa [#allocation8], 1
    %s665 = scalar_lea.sflag [#allocation8], 1
    %666 = vsyncpa %s665, 1
    %667 = vsyncpa [#allocation6], 1
    %s668 = scalar_lea.sflag [#allocation6], 1
    %669 = vsyncpa %s668, 1

</llo_original>
